<compile_context>
chip_gen: v5e
topology: v5e:2x2
jax: 0.10.0
libtpu: 0.0.40
codegen_flags: <defaults>
</compile_context>

<pallas_src>
from math import sqrt

import jax
import jax.numpy as jnp
from jax import lax
from jax.experimental import pallas as pl
from jax.experimental.pallas import tpu as pltpu


def _round_up(a, b):
    return (a + b - 1) // b * b


def _hash_u32(x):
    """splitmix32-style finalizer; good enough bit mixing for dropout masks."""
    x = x ^ (x >> jnp.uint32(16))
    x = x * jnp.uint32(0x7FEB352D)
    x = x ^ (x >> jnp.uint32(15))
    x = x * jnp.uint32(0x846CA68B)
    x = x ^ (x >> jnp.uint32(16))
    return x


def _dropout_half(h, seed_i32, layer_idx, row0_u32):
    """Dropout with p=0.5 (inverted scaling x2), decorrelated across tiles/layers."""
    rows, cols = h.shape
    r = lax.broadcasted_iota(jnp.uint32, (rows, cols), 0)
    c = lax.broadcasted_iota(jnp.uint32, (rows, cols), 1)
    # Globally unique element id (unique across row tiles too).
    gid = (row0_u32 + r) * jnp.uint32(cols) + c
    salt = jnp.uint32(((layer_idx + 1) * 0x9E3779B9) & 0xFFFFFFFF)
    seed = _hash_u32(seed_i32.astype(jnp.uint32) ^ salt)
    bits = _hash_u32(gid ^ seed)
    keep = (bits >> jnp.uint32(31)) == jnp.uint32(0)  # high bit -> p = 0.5
    return jnp.where(keep, h * 2.0, 0.0)


def _make_prenet_kernel(num_layers):
    """Fused kernel: (matmul -> ReLU -> dropout) repeated num_layers times."""

    def kernel(seed_ref, x_ref, *rest):
        w_refs = rest[:num_layers]
        o_ref = rest[num_layers]

        tile_rows = x_ref.shape[0]
        row0 = (pl.program_id(0) * tile_rows).astype(jnp.uint32)

        h = x_ref[...]  # f32 tile
        for l, w_ref in enumerate(w_refs):
            # MXU matmul: bf16 operands, f32 accumulation.
            z = jnp.dot(
                h.astype(jnp.bfloat16),
                w_ref[...],
                preferred_element_type=jnp.float32,
            )
            z = jnp.maximum(z, 0.0)          # ReLU (VPU, f32)
            h = _dropout_half(z, seed_ref[l], l, row0)
        o_ref[...] = h.astype(o_ref.dtype)

    return kernel


def prenet_forward(x, weights, seeds, *, max_tile_rows=1024):
    """Prenet forward.

    x:       (B, T, in_dim) float32
    weights: list of (out_dim, in_dim) float32 arrays (PyTorch Linear layout, no bias)
    seeds:   list of python ints, one per layer (dropout seeds)
    returns: (B, T, sizes[-1]) float32
    """
    num_layers = len(weights)
    assert num_layers >= 1 and len(seeds) == num_layers

    B, T, in_dim = x.shape
    N = B * T

    # Layer feature sizes and their lane-padded (multiple-of-128) versions.
    dims = [in_dim] + [int(w.shape[0]) for w in weights]
    pdims = [_round_up(d, 128) for d in dims]

    # Pre-transpose + zero-pad + cast weights ONCE: (out,in) -> (in_pad, out_pad) bf16.
    w_list = []
    for l, w in enumerate(weights):
        wt = jnp.asarray(w, jnp.float32).T  # (in, out)
        wt = jnp.pad(wt, ((0, pdims[l] - dims[l]), (0, pdims[l + 1] - dims[l + 1])))
        w_list.append(wt.astype(jnp.bfloat16))

    # Flatten rows; pad rows to a tile multiple and features to 128 lanes.
    tile_rows = min(max_tile_rows, _round_up(N, 8))
    n_pad = _round_up(N, tile_rows)
    h = jnp.asarray(x, jnp.float32).reshape(N, in_dim)
    h = jnp.pad(h, ((0, n_pad - N), (0, pdims[0] - in_dim)))

    seeds_arr = jnp.asarray(seeds, jnp.int32)

    grid = (n_pad // tile_rows,)

    in_specs = [pl.BlockSpec((tile_rows, pdims[0]), lambda i, seed_ref: (i, 0))]
    for l in range(num_layers):
        in_specs.append(
            pl.BlockSpec((pdims[l], pdims[l + 1]), lambda i, seed_ref: (0, 0))
        )
    out_spec = pl.BlockSpec((tile_rows, pdims[-1]), lambda i, seed_ref: (i, 0))

    out = pl.pallas_call(
        _make_prenet_kernel(num_layers),
        out_shape=jax.ShapeDtypeStruct((n_pad, pdims[-1]), jnp.float32),
        grid_spec=pltpu.PrefetchScalarGridSpec(
            num_scalar_prefetch=1,
            grid=grid,
            in_specs=in_specs,
            out_specs=out_spec,
        ),
        compiler_params=pltpu.CompilerParams(
            dimension_semantics=("parallel",),
            vmem_limit_bytes=48 * 1024 * 1024,
        ),
    )(seeds_arr, h, *w_list)

    return out[:N, : dims[-1]].reshape(B, T, dims[-1])


def _init_linear_weight(key, in_dim, out_dim):
    # LinearNorm uses xavier_uniform init; reproduce deterministically here.
    limit = sqrt(6.0 / (in_dim + out_dim))
    return jax.random.uniform(
        key, (out_dim, in_dim), minval=-limit, maxval=limit, dtype=jnp.float32
    )


if __name__ == "__main__":
    # Small, Prenet-consistent shapes: x is (batch, seq, in_dim).
    B, T = 2, 8
    in_dim = 32
    sizes = [32, 32]

    key = jax.random.PRNGKey(0)
    kx, k1, k2 = jax.random.split(key, 3)

    x = jax.random.normal(kx, (B, T, in_dim), dtype=jnp.float32)

    in_sizes = [in_dim] + sizes[:-1]
    wkeys = [k1, k2]
    weights = [
        _init_linear_weight(k, i, o) for k, i, o in zip(wkeys, in_sizes, sizes)
    ]
    seeds = [1234, 5678]  # deterministic dropout seeds, one per layer
    # TODO(synk): fixed per-call seeds give an identical dropout mask every
    # forward; thread a fresh seed per step if used in real training.

    out = prenet_forward(x, weights, seeds)
    out = jax.block_until_ready(out)

    assert out.shape == (B, T, sizes[-1])
    assert out.dtype == jnp.float32
    assert bool(jnp.all(jnp.isfinite(out)))
    print("KERNEL_OK")
</pallas_src>

<mosaic_0001>
module attributes {stable_mosaic.version = 11 : i64} {
  func.func @kernel(%arg0: i32, %arg1: memref<2xi32, #tpu.memory_space<smem>>, %arg2: memref<16x128xf32, #tpu.memory_space<vmem>>, %arg3: memref<128x128xbf16, #tpu.memory_space<vmem>>, %arg4: memref<128x128xbf16, #tpu.memory_space<vmem>>, %arg5: memref<16x128xf32, #tpu.memory_space<vmem>>) attributes {dimension_semantics = [#tpu.dimension_semantics<parallel>], iteration_bounds = array<i64: 1>, scalar_prefetch = 1 : i64, scratch_operands = 0 : i64, tpu.core_type = #tpu.core_type<tc>, window_params = [{transform_indices = @transform_0, window_bounds = array<i64: 16, 128>}, {pipeline_mode = #tpu.pipeline_mode<synchronous>, transform_indices = @transform_1, window_bounds = array<i64: 128, 128>}, {pipeline_mode = #tpu.pipeline_mode<synchronous>, transform_indices = @transform_2, window_bounds = array<i64: 128, 128>}, {transform_indices = @transform_3, window_bounds = array<i64: 16, 128>}]} {
    %c16_i32 = arith.constant 16 : i32
    %0 = arith.muli %arg0, %c16_i32 : i32
    %c0 = arith.constant 0 : index
    %c0_0 = arith.constant 0 : index
    %1 = vector.load %arg2[%c0, %c0_0] : memref<16x128xf32, #tpu.memory_space<vmem>>, vector<16x128xf32>
    %2 = arith.truncf %1 : vector<16x128xf32> to vector<16x128xbf16>
    %c0_1 = arith.constant 0 : index
    %c0_2 = arith.constant 0 : index
    %3 = vector.load %arg3[%c0_1, %c0_2] : memref<128x128xbf16, #tpu.memory_space<vmem>>, vector<128x128xbf16>
    %cst = arith.constant dense<0.000000e+00> : vector<16x128xf32>
    %4 = tpu.matmul %2, %3, %cst {dimension_numbers = #tpu.dot_dimension_numbers<[1], [0], [0], [1], [0, 0, 1, 1], [], []>} : vector<16x128xbf16>, vector<128x128xbf16>, vector<16x128xf32> -> vector<16x128xf32>
    %cst_3 = arith.constant 0.000000e+00 : f32
    %5 = vector.broadcast %cst_3 : f32 to vector<16x128xf32>
    %6 = arith.maximumf %4, %5 : vector<16x128xf32>
    %c0_4 = arith.constant 0 : index
    %7 = memref.load %arg1[%c0_4] : memref<2xi32, #tpu.memory_space<smem>>
    %8 = tpu.iota {dimensions = array<i32: 0>} : vector<16x128xi32>
    %9 = tpu.iota {dimensions = array<i32: 1>} : vector<16x128xi32>
    %10 = vector.broadcast %0 : i32 to vector<16x128xi32>
    %11 = arith.addi %10, %8 : vector<16x128xi32>
    %c128_i32 = arith.constant 128 : i32
    %12 = vector.broadcast %c128_i32 : i32 to vector<16x128xi32>
    %13 = arith.muli %11, %12 : vector<16x128xi32>
    %14 = arith.addi %13, %9 : vector<16x128xi32>
    %c-1640531527_i32 = arith.constant -1640531527 : i32
    %15 = arith.xori %7, %c-1640531527_i32 : i32
    %c16_i32_5 = arith.constant 16 : i32
    %16 = arith.shrui %15, %c16_i32_5 : i32
    %17 = arith.xori %15, %16 : i32
    %c2146121005_i32 = arith.constant 2146121005 : i32
    %18 = arith.muli %17, %c2146121005_i32 : i32
    %c15_i32 = arith.constant 15 : i32
    %19 = arith.shrui %18, %c15_i32 : i32
    %20 = arith.xori %18, %19 : i32
    %c-2073254261_i32 = arith.constant -2073254261 : i32
    %21 = arith.muli %20, %c-2073254261_i32 : i32
    %c16_i32_6 = arith.constant 16 : i32
    %22 = arith.shrui %21, %c16_i32_6 : i32
    %23 = arith.xori %21, %22 : i32
    %24 = vector.broadcast %23 : i32 to vector<16x128xi32>
    %25 = arith.xori %14, %24 : vector<16x128xi32>
    %c16_i32_7 = arith.constant 16 : i32
    %26 = vector.broadcast %c16_i32_7 : i32 to vector<16x128xi32>
    %27 = arith.shrui %25, %26 : vector<16x128xi32>
    %28 = arith.xori %25, %27 : vector<16x128xi32>
    %c2146121005_i32_8 = arith.constant 2146121005 : i32
    %29 = vector.broadcast %c2146121005_i32_8 : i32 to vector<16x128xi32>
    %30 = arith.muli %28, %29 : vector<16x128xi32>
    %c15_i32_9 = arith.constant 15 : i32
    %31 = vector.broadcast %c15_i32_9 : i32 to vector<16x128xi32>
    %32 = arith.shrui %30, %31 : vector<16x128xi32>
    %33 = arith.xori %30, %32 : vector<16x128xi32>
    %c-2073254261_i32_10 = arith.constant -2073254261 : i32
    %34 = vector.broadcast %c-2073254261_i32_10 : i32 to vector<16x128xi32>
    %35 = arith.muli %33, %34 : vector<16x128xi32>
    %c16_i32_11 = arith.constant 16 : i32
    %36 = vector.broadcast %c16_i32_11 : i32 to vector<16x128xi32>
    %37 = arith.shrui %35, %36 : vector<16x128xi32>
    %38 = arith.xori %35, %37 : vector<16x128xi32>
    %c31_i32 = arith.constant 31 : i32
    %39 = vector.broadcast %c31_i32 : i32 to vector<16x128xi32>
    %40 = arith.shrui %38, %39 : vector<16x128xi32>
    %c0_i32 = arith.constant 0 : i32
    %41 = vector.broadcast %c0_i32 : i32 to vector<16x128xi32>
    %42 = arith.cmpi eq, %40, %41 : vector<16x128xi32>
    %cst_12 = arith.constant 2.000000e+00 : f32
    %43 = vector.broadcast %cst_12 : f32 to vector<16x128xf32>
    %44 = arith.mulf %6, %43 : vector<16x128xf32>
    %cst_13 = arith.constant 0.000000e+00 : f32
    %45 = vector.broadcast %cst_13 : f32 to vector<16x128xf32>
    %46 = arith.select %42, %44, %45 : vector<16x128xi1>, vector<16x128xf32>
    %47 = arith.truncf %46 : vector<16x128xf32> to vector<16x128xbf16>
    %c0_14 = arith.constant 0 : index
    %c0_15 = arith.constant 0 : index
    %48 = vector.load %arg4[%c0_14, %c0_15] : memref<128x128xbf16, #tpu.memory_space<vmem>>, vector<128x128xbf16>
    %cst_16 = arith.constant dense<0.000000e+00> : vector<16x128xf32>
    %49 = tpu.matmul %47, %48, %cst_16 {dimension_numbers = #tpu.dot_dimension_numbers<[1], [0], [0], [1], [0, 0, 1, 1], [], []>} : vector<16x128xbf16>, vector<128x128xbf16>, vector<16x128xf32> -> vector<16x128xf32>
    %cst_17 = arith.constant 0.000000e+00 : f32
    %50 = vector.broadcast %cst_17 : f32 to vector<16x128xf32>
    %51 = arith.maximumf %49, %50 : vector<16x128xf32>
    %c1 = arith.constant 1 : index
    %52 = memref.load %arg1[%c1] : memref<2xi32, #tpu.memory_space<smem>>
    %53 = tpu.iota {dimensions = array<i32: 0>} : vector<16x128xi32>
    %54 = tpu.iota {dimensions = array<i32: 1>} : vector<16x128xi32>
    %55 = vector.broadcast %0 : i32 to vector<16x128xi32>
    %56 = arith.addi %55, %53 : vector<16x128xi32>
    %c128_i32_18 = arith.constant 128 : i32
    %57 = vector.broadcast %c128_i32_18 : i32 to vector<16x128xi32>
    %58 = arith.muli %56, %57 : vector<16x128xi32>
    %59 = arith.addi %58, %54 : vector<16x128xi32>
    %c1013904242_i32 = arith.constant 1013904242 : i32
    %60 = arith.xori %52, %c1013904242_i32 : i32
    %c16_i32_19 = arith.constant 16 : i32
    %61 = arith.shrui %60, %c16_i32_19 : i32
    %62 = arith.xori %60, %61 : i32
    %c2146121005_i32_20 = arith.constant 2146121005 : i32
    %63 = arith.muli %62, %c2146121005_i32_20 : i32
    %c15_i32_21 = arith.constant 15 : i32
    %64 = arith.shrui %63, %c15_i32_21 : i32
    %65 = arith.xori %63, %64 : i32
    %c-2073254261_i32_22 = arith.constant -2073254261 : i32
    %66 = arith.muli %65, %c-2073254261_i32_22 : i32
    %c16_i32_23 = arith.constant 16 : i32
    %67 = arith.shrui %66, %c16_i32_23 : i32
    %68 = arith.xori %66, %67 : i32
    %69 = vector.broadcast %68 : i32 to vector<16x128xi32>
    %70 = arith.xori %59, %69 : vector<16x128xi32>
    %c16_i32_24 = arith.constant 16 : i32
    %71 = vector.broadcast %c16_i32_24 : i32 to vector<16x128xi32>
    %72 = arith.shrui %70, %71 : vector<16x128xi32>
    %73 = arith.xori %70, %72 : vector<16x128xi32>
    %c2146121005_i32_25 = arith.constant 2146121005 : i32
    %74 = vector.broadcast %c2146121005_i32_25 : i32 to vector<16x128xi32>
    %75 = arith.muli %73, %74 : vector<16x128xi32>
    %c15_i32_26 = arith.constant 15 : i32
    %76 = vector.broadcast %c15_i32_26 : i32 to vector<16x128xi32>
    %77 = arith.shrui %75, %76 : vector<16x128xi32>
    %78 = arith.xori %75, %77 : vector<16x128xi32>
    %c-2073254261_i32_27 = arith.constant -2073254261 : i32
    %79 = vector.broadcast %c-2073254261_i32_27 : i32 to vector<16x128xi32>
    %80 = arith.muli %78, %79 : vector<16x128xi32>
    %c16_i32_28 = arith.constant 16 : i32
    %81 = vector.broadcast %c16_i32_28 : i32 to vector<16x128xi32>
    %82 = arith.shrui %80, %81 : vector<16x128xi32>
    %83 = arith.xori %80, %82 : vector<16x128xi32>
    %c31_i32_29 = arith.constant 31 : i32
    %84 = vector.broadcast %c31_i32_29 : i32 to vector<16x128xi32>
    %85 = arith.shrui %83, %84 : vector<16x128xi32>
    %c0_i32_30 = arith.constant 0 : i32
    %86 = vector.broadcast %c0_i32_30 : i32 to vector<16x128xi32>
    %87 = arith.cmpi eq, %85, %86 : vector<16x128xi32>
    %cst_31 = arith.constant 2.000000e+00 : f32
    %88 = vector.broadcast %cst_31 : f32 to vector<16x128xf32>
    %89 = arith.mulf %51, %88 : vector<16x128xf32>
    %cst_32 = arith.constant 0.000000e+00 : f32
    %90 = vector.broadcast %cst_32 : f32 to vector<16x128xf32>
    %91 = arith.select %87, %89, %90 : vector<16x128xi1>, vector<16x128xf32>
    %c0_33 = arith.constant 0 : index
    %c0_34 = arith.constant 0 : index
    %92 = vector.load %arg5[%c0_33, %c0_34] : memref<16x128xf32, #tpu.memory_space<vmem>>, vector<16x128xf32>
    tpu.vector_store %arg5[%c0_33, %c0_34], %91 {strides = array<i32>} : memref<16x128xf32, #tpu.memory_space<vmem>>, vector<16x128xf32>,
    return
  }
  func.func @transform_0(%arg0: i32, %arg1: memref<2xi32, #tpu.memory_space<smem>>) -> (i32, i32) {
    %c0_i32 = arith.constant 0 : i32
    %c0_i32_0 = arith.constant 0 : i32
    return %arg0, %c0_i32 : i32, i32
  }
  func.func @transform_1(%arg0: i32, %arg1: memref<2xi32, #tpu.memory_space<smem>>) -> (i32, i32) {
    %c0_i32 = arith.constant 0 : i32
    %c0_i32_0 = arith.constant 0 : i32
    %c0_i32_1 = arith.constant 0 : i32
    return %c0_i32, %c0_i32_0 : i32, i32
  }
  func.func @transform_2(%arg0: i32, %arg1: memref<2xi32, #tpu.memory_space<smem>>) -> (i32, i32) {
    %c0_i32 = arith.constant 0 : i32
    %c0_i32_0 = arith.constant 0 : i32
    %c0_i32_1 = arith.constant 0 : i32
    return %c0_i32, %c0_i32_0 : i32, i32
  }
  func.func @transform_3(%arg0: i32, %arg1: memref<2xi32, #tpu.memory_space<smem>>) -> (i32, i32) {
    %c0_i32 = arith.constant 0 : i32
    %c0_i32_0 = arith.constant 0 : i32
    return %arg0, %c0_i32 : i32, i32
  }
}

</mosaic_0001>

<llo_original>
// kernel: tpu_custom_call.1
$region0: #{tpu_custom_call.1}
  #allocation0 [shape = 'u32[]', space=smem, size = 0x4, offset = 0x4, fixed_abs, tag = 'smem constant byte address 0x4 - core index']
  #allocation1 [shape = 'u32[72,128]{1,0:T(1,128)}', space=vmem, size = 0x9000, scoped, tag = 'internal scratch']
  #allocation2 [shape = 's32[1]{0}', space=sflag, size = 0x4, scoped, tag = 'scoped memory for tpu_custom_call.1']
  #allocation3 [shape = 'u8[512]{0}', space=smem, size = 0x200, scoped, tag = 'prefetched SMEM operand 0']
  %s0 = inlined_call_operand.hbm [shape: s32[2], index: 0, kind: input, shape index: {}]
  %s1 = inlined_call_operand.hbm [shape: f32[16,128], index: 1, kind: input, shape index: {}]
  %s2 = inlined_call_operand.hbm [shape: bf16[128,128], index: 2, kind: input, shape index: {}]
  %s3 = inlined_call_operand.hbm [shape: bf16[128,128], index: 3, kind: input, shape index: {}]
  %s4 = inlined_call_operand.hbm [shape: f32[16,128], index: 4, kind: output, shape index: {}]
  %s5 = sld [smem:[#allocation0]]
  $region34: #{tpu_custom_call.1} parent=0
    _
  %s7 = ssub.s32 1, %s5
  %s8 = scalar_select 0, %s7, %s5
  %s10 = sshll.u32 %s0, 4
  %s11 = int_to_ptr.hbm [resolvable:$true] %s10
  %13 = dma.hbm_to_smem %s11, 16, [#allocation3], [#allocation2]
  %15 = dma.done [#allocation2], 16
  %16 = sfence
  $region1: #{tpu_custom_call.1} parent=0
    #allocation4 [shape = 'u8[8192]{0}', space=vmem, size = 0x2000, scoped, tag = 'input window, operand 1, single buffered']
    #allocation5 [shape = 's32[1]{0}', space=sflag, size = 0x4, scoped, tag = 'scoped memory for tpu_custom_call.1']
    #allocation6 [shape = 's32[1]{0}', space=sflag, size = 0x4, scoped, tag = 'scoped memory for tpu_custom_call.1']
    #allocation7 [shape = 'u8[32768]{0}', space=vmem, size = 0x8000, scoped, tag = 'input window, operand 2, single buffered']
    #allocation8 [shape = 's32[1]{0}', space=sflag, size = 0x4, scoped, tag = 'scoped memory for tpu_custom_call.1']
    #allocation9 [shape = 'u8[32768]{0}', space=vmem, size = 0x8000, scoped, tag = 'input window, operand 3, single buffered']
    #allocation10 [shape = 'u8[8192]{0}', space=vmem, size = 0x2000, scoped, tag = 'output window, operand 0, single buffered']
    %17 = vsyncpa [#allocation5], 0
    %18 = vsyncpa [#allocation8], 0
    %19 = vsyncpa [#allocation6], 0
    // Predicated region
    $region2: #{tpu_custom_call.1} parent=1 // pred_check
      _
    $region3: #{tpu_custom_call.1} parent=1 // pred_check_branch
      %21 = sbr.rel (0) target = $region5
    $region4: #{tpu_custom_call.1} parent=1 // pred_region
      %23 = vsyncadd [#allocation5], 0
      %s24 = sshll.u32 %s1, 4
      %s25 = int_to_ptr.hbm [resolvable:$true] %s24
      %s26 = sshll.u32 [#allocation4], 4
      %s27 = int_to_ptr.vmem [resolvable:$true] %s26
      %32 = dma.hbm_to_vmem [thread:$0]  %s25, 256, %s27, [#allocation5], 128, 128, 8
    $region5: #{tpu_custom_call.1} parent=1 // pred_fallthru
      _
    // Predicated region
    $region6: #{tpu_custom_call.1} parent=1 // pred_check
      _
    $region7: #{tpu_custom_call.1} parent=1 // pred_check_branch
      %34 = sbr.rel (0) target = $region9
    $region8: #{tpu_custom_call.1} parent=1 // pred_region
      %36 = vsyncadd [#allocation8], 0
      %s37 = sshll.u32 %s2, 4
      %s38 = int_to_ptr.hbm [resolvable:$true] %s37
      %s39 = sshll.u32 [#allocation7], 4
      %s40 = int_to_ptr.vmem [resolvable:$true] %s39
      %45 = dma.hbm_to_vmem [thread:$0]  %s38, 1024, %s40, [#allocation8], 64, 64, 4
    $region9: #{tpu_custom_call.1} parent=1 // pred_fallthru
      _
    // Predicated region
    $region10: #{tpu_custom_call.1} parent=1 // pred_check
      _
    $region11: #{tpu_custom_call.1} parent=1 // pred_check_branch
      %47 = sbr.rel (0) target = $region13
    $region12: #{tpu_custom_call.1} parent=1 // pred_region
      %49 = vsyncadd [#allocation8], 0
      %s50 = sshll.u32 %s3, 4
      %s51 = int_to_ptr.hbm [resolvable:$true] %s50
      %s52 = sshll.u32 [#allocation9], 4
      %s53 = int_to_ptr.vmem [resolvable:$true] %s52
      %58 = dma.hbm_to_vmem [thread:$0]  %s51, 1024, %s53, [#allocation8], 64, 64, 4
    $region13: #{tpu_custom_call.1} parent=1 // pred_fallthru
      _
    // Predicated region
    $region14: #{tpu_custom_call.1} parent=1 // pred_check
      _
    $region15: #{tpu_custom_call.1} parent=1 // pred_check_branch
      %60 = sbr.rel (0) target = $region17
    $region16: #{tpu_custom_call.1} parent=1 // pred_region
      %62 = dma.done [#allocation5], 256
    $region17: #{tpu_custom_call.1} parent=1 // pred_fallthru
      _
    // Predicated region
    $region18: #{tpu_custom_call.1} parent=1 // pred_check
      _
    $region19: #{tpu_custom_call.1} parent=1 // pred_check_branch
      %64 = sbr.rel (0) target = $region21
    $region20: #{tpu_custom_call.1} parent=1 // pred_region
      %66 = dma.done [#allocation8], 1024
    $region21: #{tpu_custom_call.1} parent=1 // pred_fallthru
      _
    // Predicated region
    $region22: #{tpu_custom_call.1} parent=1 // pred_check
      _
    $region23: #{tpu_custom_call.1} parent=1 // pred_check_branch
      %68 = sbr.rel (0) target = $region25
    $region24: #{tpu_custom_call.1} parent=1 // pred_region
      %70 = dma.done [#allocation8], 1024
    $region25: #{tpu_custom_call.1} parent=1 // pred_fallthru
      _
    %s71 = smul.u32 0, 16
    %v72 = vld [vmem:[#allocation4] sm:$0xff]
    %v73 = vld [vmem:[#allocation4 + $0x8] sm:$0xff]
    %v74 = vpack.c.bf16 %v73, %v72
    %v75 = vld [vmem:[#allocation7] sm:$0xf]
    %v76 = vld [vmem:[#allocation7 + $0x4] sm:$0xf]
    %v77 = vld [vmem:[#allocation7 + $0x8] sm:$0xf]
    %v78 = vld [vmem:[#allocation7 + $0xc] sm:$0xf]
    %v79 = vld [vmem:[#allocation7 + $0x10] sm:$0xf]
    %v80 = vld [vmem:[#allocation7 + $0x14] sm:$0xf]
    %v81 = vld [vmem:[#allocation7 + $0x18] sm:$0xf]
    %v82 = vld [vmem:[#allocation7 + $0x1c] sm:$0xf]
    %v83 = vld [vmem:[#allocation7 + $0x20] sm:$0xf]
    %v84 = vld [vmem:[#allocation7 + $0x24] sm:$0xf]
    %v85 = vld [vmem:[#allocation7 + $0x28] sm:$0xf]
    %v86 = vld [vmem:[#allocation7 + $0x2c] sm:$0xf]
    %v87 = vld [vmem:[#allocation7 + $0x30] sm:$0xf]
    %v88 = vld [vmem:[#allocation7 + $0x34] sm:$0xf]
    %v89 = vld [vmem:[#allocation7 + $0x38] sm:$0xf]
    %v90 = vld [vmem:[#allocation7 + $0x3c] sm:$0xf]
    %v107 = vunpack.c.l.b16 %v75
    %v108 = vunpack.c.l.b16 %v76
    %v109 = vunpack.c.l.b16 %v77
    %v110 = vunpack.c.l.b16 %v78
    %v111 = vunpack.c.l.b16 %v79
    %v112 = vunpack.c.l.b16 %v80
    %v113 = vunpack.c.l.b16 %v81
    %v114 = vunpack.c.l.b16 %v82
    %v115 = vunpack.c.l.b16 %v83
    %v116 = vunpack.c.l.b16 %v84
    %v117 = vunpack.c.l.b16 %v85
    %v118 = vunpack.c.l.b16 %v86
    %v119 = vunpack.c.l.b16 %v87
    %v120 = vunpack.c.l.b16 %v88
    %v121 = vunpack.c.l.b16 %v89
    %v122 = vunpack.c.l.b16 %v90
    %v123 = vpack.c.b16 %v108, %v107
    %v124 = vpack.c.b16 %v110, %v109
    %v125 = vpack.c.b16 %v112, %v111
    %v126 = vpack.c.b16 %v114, %v113
    %v127 = vpack.c.b16 %v116, %v115
    %v128 = vpack.c.b16 %v118, %v117
    %v129 = vpack.c.b16 %v120, %v119
    %v130 = vpack.c.b16 %v122, %v121
    %139 = vmatpush.bf16.msra.mxu0 %v130
    %140 = vmatpush.bf16.msra.mxu0 %v129
    %141 = vmatpush.bf16.msra.mxu0 %v128
    %142 = vmatpush.bf16.msra.mxu0 %v127
    %143 = vmatpush.bf16.msra.mxu0 %v126
    %144 = vmatpush.bf16.msra.mxu0 %v125
    %145 = vmatpush.bf16.msra.mxu0 %v124
    %146 = vmatpush.bf16.msra.mxu0 %v123
    %147 = vmatmul.bf16.gmra.mxu0 %v74
    %v148 = vpop.f32.mrf.mxu0
    %v149 = vadd.f32 0.0, %v148
    %v150 = vpop.f32.mrf.mxu0
    %v151 = vadd.f32 0.0, %v150
    %152 = vdwg.mxu0
    %v153 = vmax.f32 %v149, 0.0
    %v154 = vmax.f32 %v151, 0.0
    %s155 = sld [smem:[#allocation3]]
    %v156 = vlaneseq
    %v157 = vshrl.u32 %v156, 7
    %v158 = vadd.s32 %v157, 8
    %v159 = vlaneseq
    %v160 = vand.u32 %v159, 127
    %v161 = vstv %s71
    %v162 = vadd.s32 %v161, %v157
    %v163 = vadd.s32 %v161, %v158
    %v164 = vmul.u32 %v162, 128
    %v165 = vmul.u32 %v163, 128
    %v166 = vadd.s32 %v164, %v160
    %v167 = vadd.s32 %v165, %v160
    %s168 = sxor.u32 %s155, 2654435769
    %s169 = sshrl.u32 %s168, 16
    %s170 = sxor.u32 %s168, %s169
    %s171 = smul.u32 %s170, 2146121005
    %s172 = sshrl.u32 %s171, 15
    %s173 = sxor.u32 %s171, %s172
    %s174 = smul.u32 %s173, 2221713035
    %s175 = sshrl.u32 %s174, 16
    %s176 = sxor.u32 %s174, %s175
    %v177 = vstv %s176
    %v178 = vxor.u32 %v166, %v177
    %v179 = vxor.u32 %v167, %v177
    %v180 = vshrl.u32 %v178, 16
    %v181 = vshrl.u32 %v179, 16
    %v182 = vxor.u32 %v178, %v180
    %v183 = vxor.u32 %v179, %v181
    %v184 = vmul.u32 %v182, 2146121005
    %v185 = vmul.u32 %v183, 2146121005
    %v186 = vshrl.u32 %v184, 15
    %v187 = vshrl.u32 %v185, 15
    %v188 = vxor.u32 %v184, %v186
    %v189 = vxor.u32 %v185, %v187
    %v190 = vmul.u32 %v188, 2221713035
    %v191 = vmul.u32 %v189, 2221713035
    %v192 = vshrl.u32 %v190, 16
    %v193 = vshrl.u32 %v191, 16
    %v194 = vxor.u32 %v190, %v192
    %v195 = vxor.u32 %v191, %v193
    %v196 = vshrl.u32 %v194, 31
    %v197 = vshrl.u32 %v195, 31
    %vm198 = vcmp.eq.s32.totalorder %v196, 0
    %vm199 = vcmp.eq.s32.totalorder %v197, 0
    %v200 = vmul.f32 %v153, 2.0
    %v201 = vmul.f32 %v154, 2.0
    %v202 = vsel %vm198, %v200, 0.0
    %v203 = vsel %vm199, %v201, 0.0
    %v204 = vpack.c.bf16 %v203, %v202
    %v205 = vld [vmem:[#allocation9] sm:$0xf]
    %v206 = vld [vmem:[#allocation9 + $0x4] sm:$0xf]
    %v207 = vld [vmem:[#allocation9 + $0x8] sm:$0xf]
    %v208 = vld [vmem:[#allocation9 + $0xc] sm:$0xf]
    %v209 = vld [vmem:[#allocation9 + $0x10] sm:$0xf]
    %v210 = vld [vmem:[#allocation9 + $0x14] sm:$0xf]
    %v211 = vld [vmem:[#allocation9 + $0x18] sm:$0xf]
    %v212 = vld [vmem:[#allocation9 + $0x1c] sm:$0xf]
    %v213 = vld [vmem:[#allocation9 + $0x20] sm:$0xf]
    %v214 = vld [vmem:[#allocation9 + $0x24] sm:$0xf]
    %v215 = vld [vmem:[#allocation9 + $0x28] sm:$0xf]
    %v216 = vld [vmem:[#allocation9 + $0x2c] sm:$0xf]
    %v217 = vld [vmem:[#allocation9 + $0x30] sm:$0xf]
    %v218 = vld [vmem:[#allocation9 + $0x34] sm:$0xf]
    %v219 = vld [vmem:[#allocation9 + $0x38] sm:$0xf]
    %v220 = vld [vmem:[#allocation9 + $0x3c] sm:$0xf]
    %v237 = vunpack.c.l.b16 %v205
    %v238 = vunpack.c.l.b16 %v206
    %v239 = vunpack.c.l.b16 %v207
    %v240 = vunpack.c.l.b16 %v208
    %v241 = vunpack.c.l.b16 %v209
    %v242 = vunpack.c.l.b16 %v210
    %v243 = vunpack.c.l.b16 %v211
    %v244 = vunpack.c.l.b16 %v212
    %v245 = vunpack.c.l.b16 %v213
    %v246 = vunpack.c.l.b16 %v214
    %v247 = vunpack.c.l.b16 %v215
    %v248 = vunpack.c.l.b16 %v216
    %v249 = vunpack.c.l.b16 %v217
    %v250 = vunpack.c.l.b16 %v218
    %v251 = vunpack.c.l.b16 %v219
    %v252 = vunpack.c.l.b16 %v220
    %v253 = vpack.c.b16 %v238, %v237
    %v254 = vpack.c.b16 %v240, %v239
    %v255 = vpack.c.b16 %v242, %v241
    %v256 = vpack.c.b16 %v244, %v243
    %v257 = vpack.c.b16 %v246, %v245
    %v258 = vpack.c.b16 %v248, %v247
    %v259 = vpack.c.b16 %v250, %v249
    %v260 = vpack.c.b16 %v252, %v251
    %269 = vmatpush.bf16.msra.mxu0 %v260
    %270 = vmatpush.bf16.msra.mxu0 %v259
    %271 = vmatpush.bf16.msra.mxu0 %v258
    %272 = vmatpush.bf16.msra.mxu0 %v257
    %273 = vmatpush.bf16.msra.mxu0 %v256
    %274 = vmatpush.bf16.msra.mxu0 %v255
    %275 = vmatpush.bf16.msra.mxu0 %v254
    %276 = vmatpush.bf16.msra.mxu0 %v253
    %277 = vmatmul.bf16.gmra.mxu0 %v204
    %v278 = vpop.f32.mrf.mxu0
    %v279 = vadd.f32 0.0, %v278
    %v280 = vpop.f32.mrf.mxu0
    %v281 = vadd.f32 0.0, %v280
    %282 = vdwg.mxu0
    %v283 = vmax.f32 %v279, 0.0
    %v284 = vmax.f32 %v281, 0.0
    %s285 = sld [smem:[#allocation3 + $0x1]]
    %s286 = sxor.u32 %s285, 1013904242
    %s287 = sshrl.u32 %s286, 16
    %s288 = sxor.u32 %s286, %s287
    %s289 = smul.u32 %s288, 2146121005
    %s290 = sshrl.u32 %s289, 15
    %s291 = sxor.u32 %s289, %s290
    %s292 = smul.u32 %s291, 2221713035
    %s293 = sshrl.u32 %s292, 16
    %s294 = sxor.u32 %s292, %s293
    %v295 = vstv %s294
    %v296 = vxor.u32 %v166, %v295
    %v297 = vxor.u32 %v167, %v295
    %v298 = vshrl.u32 %v296, 16
    %v299 = vshrl.u32 %v297, 16
    %v300 = vxor.u32 %v296, %v298
    %v301 = vxor.u32 %v297, %v299
    %v302 = vmul.u32 %v300, 2146121005
    %v303 = vmul.u32 %v301, 2146121005
    %v304 = vshrl.u32 %v302, 15
    %v305 = vshrl.u32 %v303, 15
    %v306 = vxor.u32 %v302, %v304
    %v307 = vxor.u32 %v303, %v305
    %v308 = vmul.u32 %v306, 2221713035
    %v309 = vmul.u32 %v307, 2221713035
    %v310 = vshrl.u32 %v308, 16
    %v311 = vshrl.u32 %v309, 16
    %v312 = vxor.u32 %v308, %v310
    %v313 = vxor.u32 %v309, %v311
    %v314 = vshrl.u32 %v312, 31
    %v315 = vshrl.u32 %v313, 31
    %vm316 = vcmp.eq.s32.totalorder %v314, 0
    %vm317 = vcmp.eq.s32.totalorder %v315, 0
    %v318 = vmul.f32 %v283, 2.0
    %v319 = vmul.f32 %v284, 2.0
    %v320 = vsel %vm316, %v318, 0.0
    %v321 = vsel %vm317, %v319, 0.0
    %322 = vst [vmem:[#allocation10] sm:$0xff] %v320
    %323 = vst [vmem:[#allocation10 + $0x8] sm:$0xff] %v321
    // Predicated region
    $region26: #{tpu_custom_call.1} parent=1 // pred_check
      _
    $region27: #{tpu_custom_call.1} parent=1 // pred_check_branch
      %325 = sbr.rel (0) target = $region29
    $region28: #{tpu_custom_call.1} parent=1 // pred_region
      %327 = vsyncadd [#allocation6], 0
      %s328 = sshll.u32 [#allocation10], 4
      %s329 = int_to_ptr.vmem [resolvable:$true] %s328
      %s330 = sshll.u32 %s4, 4
      %s331 = int_to_ptr.hbm [resolvable:$true] %s330
      %336 = dma.vmem_to_hbm [thread:$0]  %s329, 256, %s331, [#allocation6], 128, 128, 8
    $region29: #{tpu_custom_call.1} parent=1 // pred_fallthru
      _
    // Predicated region
    $region30: #{tpu_custom_call.1} parent=1 // pred_check
      _
    $region31: #{tpu_custom_call.1} parent=1 // pred_check_branch
      %338 = sbr.rel (0) target = $region33
    $region32: #{tpu_custom_call.1} parent=1 // pred_region
      %340 = dma.done [#allocation6], 256
    $region33: #{tpu_custom_call.1} parent=1 // pred_fallthru
      _
    %341 = vsyncpa [#allocation5], 1
    %342 = vsyncpa [#allocation8], 1
    %343 = vsyncpa [#allocation6], 1

</llo_original>
